<compile_context>
chip_gen: v7x
topology: tpu7x:2x2x1
jax: 0.10.0
libtpu: 0.0.40
codegen_flags: <defaults>
</compile_context>

<pallas_src>
import functools

import jax
import jax.numpy as jnp
from jax.experimental import pallas as pl
from jax.experimental.pallas import tpu as pltpu


def _round_up(x, m):
    return (x + m - 1) // m * m


def _smooth_loss_kernel(w_ref, depth_ref, img_ref, out_ref, *, nb, C):
    """One grid step: `nb` batch elements -> one f32 partial sum (broadcast
    into a lane-dense (1, 8, 128) output block)."""
    Hp, Wp = depth_ref.shape[-2], depth_ref.shape[-1]

    # Precomputed, VMEM-resident weights: fold wrap/pad masking and the
    # 1/numel normalizers.  (Padded rows/cols/batches are zeros, so any term
    # not killed by these masks is already exactly zero.)
    wx = w_ref[0]                                # (Hp, Wp) f32
    wy = w_ref[1]                                # (Hp, Wp) f32
    neg_inv_c = jnp.float32(-1.0 / C)

    acc = jnp.zeros((Hp, Wp), jnp.float32)
    for b in range(nb):                          # static unroll, nb is small
        d = depth_ref[b].astype(jnp.float32)                     # (Hp, Wp)
        # x[:, j] - x[:, j+1]  and  x[i, :] - x[i+1, :] via full-tile rolls
        # (shift = size-1 == -1 mod size); wrap terms are masked by wx/wy.
        gdx = jnp.abs(d - pltpu.roll(d, Wp - 1, axis=1))
        gdy = jnp.abs(d - pltpu.roll(d, Hp - 1, axis=0))

        gix = jnp.zeros((Hp, Wp), jnp.float32)
        giy = jnp.zeros((Hp, Wp), jnp.float32)
        for c in range(C):                       # static unroll over channels
            im = img_ref[b, c].astype(jnp.float32)               # (Hp, Wp)
            gix = gix + jnp.abs(im - pltpu.roll(im, Wp - 1, axis=1))
            giy = giy + jnp.abs(im - pltpu.roll(im, Hp - 1, axis=0))

        acc = acc + (gdx * jnp.exp(gix * neg_inv_c) * wx
                     + gdy * jnp.exp(giy * neg_inv_c) * wy)

    out_ref[...] = jnp.full(out_ref.shape, jnp.sum(acc), dtype=jnp.float32)


def smooth_loss(depth, img):
    # Rank handling identical to the PyTorch module.
    if depth.ndim == 2:
        depth_ = depth[None]                       # (1, H, W)
    elif depth.ndim == 3:
        depth_ = depth                             # (N, H, W)
    elif depth.ndim == 4:
        # TODO(synk): depth with a channel dim > 1 is not supported here.
        assert depth.shape[1] == 1, "depth channel dim must be 1"
        depth_ = depth[:, 0]                       # (N, H, W)
    else:
        raise ValueError("depth must be 2D, 3D, or 4D")

    N, H, W = depth_.shape
    Ni, C, Hi, Wi = img.shape
    assert (Ni, Hi, Wi) == (N, H, W), "img must be (N, C, H, W) matching depth"

    Hp, Wp = _round_up(H, 8), _round_up(W, 128)

    # NOTE: for H==1 or W==1 PyTorch's mean() over an empty tensor is NaN;
    # here we guard the normalizer and that direction contributes 0.
    nx = N * H * (W - 1)
    ny = N * (H - 1) * W
    inv_nx = 1.0 / float(nx) if nx > 0 else 0.0
    inv_ny = 1.0 / float(ny) if ny > 0 else 0.0

    # Generation-aware VMEM budgeting (v5e/v6e: 128 MiB, v7x: 64 MiB/TC).
    try:
        info = pltpu.get_tpu_info()
        vmem_cap = int(getattr(info, "vmem_capacity_bytes", 64 * 1024 * 1024))
    except Exception:  # CPU interpret / older runtimes
        vmem_cap = 64 * 1024 * 1024
    block_budget = max(2 * 1024 * 1024, vmem_cap // 8)   # single-buffer input block
    vmem_limit = int(min(vmem_cap, 2 * block_budget + 32 * 1024 * 1024))

    # Pack as many batch elements per grid step as the block budget allows,
    # but keep at least 2 parallel grid steps (dual-TC v7x + DMA overlap).
    bytes_per_batch = (Hp * Wp * depth_.dtype.itemsize
                       + C * Hp * Wp * img.dtype.itemsize)
    cap = max(1, block_budget // max(1, bytes_per_batch))
    if N >= 2:
        cap = min(cap, pl.cdiv(N, 2))
    nb = int(min(N, cap))
    g = pl.cdiv(N, nb)
    Np = g * nb        # batch padded with zeros -> padded elements add 0 loss

    # Pad in the *original* dtype (zeros), only when needed.
    if (Np, Hp, Wp) != (N, H, W):
        depth_p = jnp.pad(depth_, ((0, Np - N), (0, Hp - H), (0, Wp - W)))
        img_p = jnp.pad(img, ((0, Np - N), (0, 0), (0, Hp - H), (0, Wp - W)))
    else:
        depth_p, img_p = depth_, img

    # Precomputed weight masks (wrap column/row dropped, normalizers folded).
    col = jax.lax.broadcasted_iota(jnp.int32, (Hp, Wp), 1)
    row = jax.lax.broadcasted_iota(jnp.int32, (Hp, Wp), 0)
    wx = jnp.where(col < W - 1, inv_nx, 0.0).astype(jnp.float32)
    wy = jnp.where(row < H - 1, inv_ny, 0.0).astype(jnp.float32)
    wxy = jnp.stack([wx, wy])                      # (2, Hp, Wp)

    kernel = functools.partial(_smooth_loss_kernel, nb=nb, C=C)

    partials = pl.pallas_call(
        kernel,
        out_shape=jax.ShapeDtypeStruct((g, 8, 128), jnp.float32),
        grid_spec=pltpu.PrefetchScalarGridSpec(
            num_scalar_prefetch=0,
            grid=(g,),
            in_specs=[
                # Constant index_map -> weight block stays VMEM-resident.
                pl.BlockSpec((2, Hp, Wp), lambda i: (0, 0, 0)),
                pl.BlockSpec((nb, Hp, Wp), lambda i: (i, 0, 0)),
                pl.BlockSpec((nb, C, Hp, Wp), lambda i: (i, 0, 0, 0)),
            ],
            out_specs=pl.BlockSpec((1, 8, 128), lambda i: (i, 0, 0)),
        ),
        compiler_params=pltpu.CompilerParams(
            dimension_semantics=("parallel",),
            vmem_limit_bytes=vmem_limit,
        ),
    )(wxy, depth_p, img_p)

    # Tiny cross-block reduction in plain JAX (keeps the grid axis parallel).
    return jnp.sum(partials[:, 0, 0])


def _smooth_loss_ref(depth, img):
    if depth.ndim == 3:
        depth_ = depth[:, None]
    elif depth.ndim == 4:
        depth_ = depth
    else:
        depth_ = depth[None, None]
    depth_ = depth_.astype(jnp.float32)
    img = img.astype(jnp.float32)
    gdx = jnp.abs(depth_[:, :, :, :-1] - depth_[:, :, :, 1:])
    gdy = jnp.abs(depth_[:, :, :-1, :] - depth_[:, :, 1:, :])
    gix = jnp.mean(jnp.abs(img[:, :, :, :-1] - img[:, :, :, 1:]), axis=1,
                   keepdims=True)
    giy = jnp.mean(jnp.abs(img[:, :, :-1, :] - img[:, :, 1:, :]), axis=1,
                   keepdims=True)
    return (gdx * jnp.exp(-gix)).mean() + (gdy * jnp.exp(-giy)).mean()


if __name__ == "__main__":
    key = jax.random.PRNGKey(0)
    k1, k2 = jax.random.split(key)
    N, C, H, W = 2, 4, 16, 16
    depth = jax.random.uniform(k1, (N, 1, H, W), dtype=jnp.float32)  # NCHW
    img = jax.random.uniform(k2, (N, C, H, W), dtype=jnp.float32)    # NCHW

    out = smooth_loss(depth, img)
    jax.block_until_ready(out)

    ref = _smooth_loss_ref(depth, img)
    assert jnp.allclose(out, ref, rtol=1e-5, atol=1e-6), (out, ref)
    print("KERNEL_OK")
</pallas_src>

<mosaic_0001>
module attributes {stable_mosaic.version = 11 : i64} {
  func.func @_smooth_loss_kernel(%arg0: i32, %arg1: memref<2x16x128xf32, #tpu.memory_space<vmem>>, %arg2: memref<1x16x128xf32, #tpu.memory_space<vmem>>, %arg3: memref<1x4x16x128xf32, #tpu.memory_space<vmem>>, %arg4: memref<1x8x128xf32, #tpu.memory_space<vmem>>) attributes {dimension_semantics = [#tpu.dimension_semantics<parallel>], iteration_bounds = array<i64: 2>, scalar_prefetch = 0 : i64, scratch_operands = 0 : i64, tpu.core_type = #tpu.core_type<tc>, window_params = [{pipeline_mode = #tpu.pipeline_mode<synchronous>, transform_indices = @transform_0, window_bounds = array<i64: 2, 16, 128>}, {transform_indices = @transform_1, window_bounds = array<i64: 1, 16, 128>}, {transform_indices = @transform_2, window_bounds = array<i64: 1, 4, 16, 128>}, {transform_indices = @transform_3, window_bounds = array<i64: 1, 8, 128>}]} {
    %c0 = arith.constant 0 : index
    %c0_0 = arith.constant 0 : index
    %c0_1 = arith.constant 0 : index
    %0 = vector.load %arg1[%c0, %c0_0, %c0_1] : memref<2x16x128xf32, #tpu.memory_space<vmem>>, vector<1x16x128xf32>
    %1 = vector.shape_cast %0 : vector<1x16x128xf32> to vector<16x128xf32>
    %c1 = arith.constant 1 : index
    %c0_2 = arith.constant 0 : index
    %c0_3 = arith.constant 0 : index
    %2 = vector.load %arg1[%c1, %c0_2, %c0_3] : memref<2x16x128xf32, #tpu.memory_space<vmem>>, vector<1x16x128xf32>
    %3 = vector.shape_cast %2 : vector<1x16x128xf32> to vector<16x128xf32>
    %cst = arith.constant 0.000000e+00 : f32
    %4 = vector.broadcast %cst : f32 to vector<16x128xf32>
    %c0_4 = arith.constant 0 : index
    %c0_5 = arith.constant 0 : index
    %c0_6 = arith.constant 0 : index
    %5 = vector.load %arg2[%c0_4, %c0_5, %c0_6] : memref<1x16x128xf32, #tpu.memory_space<vmem>>, vector<1x16x128xf32>
    %6 = vector.shape_cast %5 : vector<1x16x128xf32> to vector<16x128xf32>
    %c127_i32 = arith.constant 127 : i32
    %7 = tpu.dynamic_rotate %6 by %c127_i32 dim 1 : vector<16x128xf32>, i32 -> vector<16x128xf32>
    %8 = arith.subf %6, %7 : vector<16x128xf32>
    %9 = math.absf %8 : vector<16x128xf32>
    %c15_i32 = arith.constant 15 : i32
    %10 = tpu.dynamic_rotate %6 by %c15_i32 dim 0 : vector<16x128xf32>, i32 -> vector<16x128xf32>
    %11 = arith.subf %6, %10 : vector<16x128xf32>
    %12 = math.absf %11 : vector<16x128xf32>
    %cst_7 = arith.constant 0.000000e+00 : f32
    %13 = vector.broadcast %cst_7 : f32 to vector<16x128xf32>
    %cst_8 = arith.constant 0.000000e+00 : f32
    %14 = vector.broadcast %cst_8 : f32 to vector<16x128xf32>
    %c0_9 = arith.constant 0 : index
    %c0_10 = arith.constant 0 : index
    %c0_11 = arith.constant 0 : index
    %c0_12 = arith.constant 0 : index
    %15 = vector.load %arg3[%c0_9, %c0_10, %c0_11, %c0_12] : memref<1x4x16x128xf32, #tpu.memory_space<vmem>>, vector<1x1x16x128xf32>
    %16 = vector.shape_cast %15 : vector<1x1x16x128xf32> to vector<16x128xf32>
    %c127_i32_13 = arith.constant 127 : i32
    %17 = tpu.dynamic_rotate %16 by %c127_i32_13 dim 1 : vector<16x128xf32>, i32 -> vector<16x128xf32>
    %18 = arith.subf %16, %17 : vector<16x128xf32>
    %19 = math.absf %18 : vector<16x128xf32>
    %20 = arith.addf %13, %19 : vector<16x128xf32>
    %c15_i32_14 = arith.constant 15 : i32
    %21 = tpu.dynamic_rotate %16 by %c15_i32_14 dim 0 : vector<16x128xf32>, i32 -> vector<16x128xf32>
    %22 = arith.subf %16, %21 : vector<16x128xf32>
    %23 = math.absf %22 : vector<16x128xf32>
    %24 = arith.addf %14, %23 : vector<16x128xf32>
    %c0_15 = arith.constant 0 : index
    %c1_16 = arith.constant 1 : index
    %c0_17 = arith.constant 0 : index
    %c0_18 = arith.constant 0 : index
    %25 = vector.load %arg3[%c0_15, %c1_16, %c0_17, %c0_18] : memref<1x4x16x128xf32, #tpu.memory_space<vmem>>, vector<1x1x16x128xf32>
    %26 = vector.shape_cast %25 : vector<1x1x16x128xf32> to vector<16x128xf32>
    %c127_i32_19 = arith.constant 127 : i32
    %27 = tpu.dynamic_rotate %26 by %c127_i32_19 dim 1 : vector<16x128xf32>, i32 -> vector<16x128xf32>
    %28 = arith.subf %26, %27 : vector<16x128xf32>
    %29 = math.absf %28 : vector<16x128xf32>
    %30 = arith.addf %20, %29 : vector<16x128xf32>
    %c15_i32_20 = arith.constant 15 : i32
    %31 = tpu.dynamic_rotate %26 by %c15_i32_20 dim 0 : vector<16x128xf32>, i32 -> vector<16x128xf32>
    %32 = arith.subf %26, %31 : vector<16x128xf32>
    %33 = math.absf %32 : vector<16x128xf32>
    %34 = arith.addf %24, %33 : vector<16x128xf32>
    %c0_21 = arith.constant 0 : index
    %c2 = arith.constant 2 : index
    %c0_22 = arith.constant 0 : index
    %c0_23 = arith.constant 0 : index
    %35 = vector.load %arg3[%c0_21, %c2, %c0_22, %c0_23] : memref<1x4x16x128xf32, #tpu.memory_space<vmem>>, vector<1x1x16x128xf32>
    %36 = vector.shape_cast %35 : vector<1x1x16x128xf32> to vector<16x128xf32>
    %c127_i32_24 = arith.constant 127 : i32
    %37 = tpu.dynamic_rotate %36 by %c127_i32_24 dim 1 : vector<16x128xf32>, i32 -> vector<16x128xf32>
    %38 = arith.subf %36, %37 : vector<16x128xf32>
    %39 = math.absf %38 : vector<16x128xf32>
    %40 = arith.addf %30, %39 : vector<16x128xf32>
    %c15_i32_25 = arith.constant 15 : i32
    %41 = tpu.dynamic_rotate %36 by %c15_i32_25 dim 0 : vector<16x128xf32>, i32 -> vector<16x128xf32>
    %42 = arith.subf %36, %41 : vector<16x128xf32>
    %43 = math.absf %42 : vector<16x128xf32>
    %44 = arith.addf %34, %43 : vector<16x128xf32>
    %c0_26 = arith.constant 0 : index
    %c3 = arith.constant 3 : index
    %c0_27 = arith.constant 0 : index
    %c0_28 = arith.constant 0 : index
    %45 = vector.load %arg3[%c0_26, %c3, %c0_27, %c0_28] : memref<1x4x16x128xf32, #tpu.memory_space<vmem>>, vector<1x1x16x128xf32>
    %46 = vector.shape_cast %45 : vector<1x1x16x128xf32> to vector<16x128xf32>
    %c127_i32_29 = arith.constant 127 : i32
    %47 = tpu.dynamic_rotate %46 by %c127_i32_29 dim 1 : vector<16x128xf32>, i32 -> vector<16x128xf32>
    %48 = arith.subf %46, %47 : vector<16x128xf32>
    %49 = math.absf %48 : vector<16x128xf32>
    %50 = arith.addf %40, %49 : vector<16x128xf32>
    %c15_i32_30 = arith.constant 15 : i32
    %51 = tpu.dynamic_rotate %46 by %c15_i32_30 dim 0 : vector<16x128xf32>, i32 -> vector<16x128xf32>
    %52 = arith.subf %46, %51 : vector<16x128xf32>
    %53 = math.absf %52 : vector<16x128xf32>
    %54 = arith.addf %44, %53 : vector<16x128xf32>
    %cst_31 = arith.constant -2.500000e-01 : f32
    %55 = vector.broadcast %cst_31 : f32 to vector<16x128xf32>
    %56 = arith.mulf %50, %55 : vector<16x128xf32>
    %57 = math.exp %56 : vector<16x128xf32>
    %58 = arith.mulf %9, %57 : vector<16x128xf32>
    %59 = arith.mulf %58, %1 : vector<16x128xf32>
    %cst_32 = arith.constant -2.500000e-01 : f32
    %60 = vector.broadcast %cst_32 : f32 to vector<16x128xf32>
    %61 = arith.mulf %54, %60 : vector<16x128xf32>
    %62 = math.exp %61 : vector<16x128xf32>
    %63 = arith.mulf %12, %62 : vector<16x128xf32>
    %64 = arith.mulf %63, %3 : vector<16x128xf32>
    %65 = arith.addf %59, %64 : vector<16x128xf32>
    %66 = arith.addf %4, %65 : vector<16x128xf32>
    %67 = vector.shape_cast %66 : vector<16x128xf32> to vector<1x16x128xf32>
    %cst_33 = arith.constant dense<0.000000e+00> : vector<1xf32>
    %68 = vector.multi_reduction <add>, %67, %cst_33 [1, 2] : vector<1x16x128xf32> to vector<1xf32>
    %69 = vector.shape_cast %68 : vector<1xf32> to vector<1x1x1xf32>
    %70 = vector.extract %69[0, 0, 0] : f32 from vector<1x1x1xf32>
    %71 = vector.broadcast %70 : f32 to vector<1x8x128xf32>
    %c0_34 = arith.constant 0 : index
    %c0_35 = arith.constant 0 : index
    %c0_36 = arith.constant 0 : index
    %72 = vector.load %arg4[%c0_34, %c0_35, %c0_36] : memref<1x8x128xf32, #tpu.memory_space<vmem>>, vector<1x8x128xf32>
    tpu.vector_store %arg4[%c0_34, %c0_35, %c0_36], %71 {strides = array<i32>} : memref<1x8x128xf32, #tpu.memory_space<vmem>>, vector<1x8x128xf32>,
    return
  }
  func.func @transform_0(%arg0: i32) -> (i32, i32, i32) {
    %c0_i32 = arith.constant 0 : i32
    %c0_i32_0 = arith.constant 0 : i32
    %c0_i32_1 = arith.constant 0 : i32
    %c0_i32_2 = arith.constant 0 : i32
    return %c0_i32, %c0_i32_0, %c0_i32_1 : i32, i32, i32
  }
  func.func @transform_1(%arg0: i32) -> (i32, i32, i32) {
    %c0_i32 = arith.constant 0 : i32
    %c0_i32_0 = arith.constant 0 : i32
    %c0_i32_1 = arith.constant 0 : i32
    return %arg0, %c0_i32, %c0_i32_0 : i32, i32, i32
  }
  func.func @transform_2(%arg0: i32) -> (i32, i32, i32, i32) {
    %c0_i32 = arith.constant 0 : i32
    %c0_i32_0 = arith.constant 0 : i32
    %c0_i32_1 = arith.constant 0 : i32
    %c0_i32_2 = arith.constant 0 : i32
    return %arg0, %c0_i32, %c0_i32_0, %c0_i32_1 : i32, i32, i32, i32
  }
  func.func @transform_3(%arg0: i32) -> (i32, i32, i32) {
    %c0_i32 = arith.constant 0 : i32
    %c0_i32_0 = arith.constant 0 : i32
    %c0_i32_1 = arith.constant 0 : i32
    return %arg0, %c0_i32, %c0_i32_0 : i32, i32, i32
  }
}

</mosaic_0001>

<llo_original>
// kernel: tpu_custom_call.1
$region0: #{tpu_custom_call.1}
  #allocation0 [shape = 'u32[]', space=smem, size = 0x4, offset = 0x4, fixed_abs, tag = 'smem constant byte address 0x4 - core index']
  #allocation1 [shape = 'u32[144,128]{1,0:T(1,128)}', space=vmem, size = 0x12000, scoped, tag = 'internal scratch']
  %s0 = inlined_call_operand.hbm [shape: f32[2,16,128], index: 0, kind: input, shape index: {}]
  %s1 = inlined_call_operand.hbm [shape: f32[2,16,128], index: 1, kind: input, shape index: {}]
  %s2 = inlined_call_operand.hbm [shape: f32[2,4,16,128], index: 2, kind: input, shape index: {}]
  %s3 = inlined_call_operand.hbm [shape: f32[2,8,128], index: 3, kind: output, shape index: {}]
  %s4 = sld [smem:[#allocation0]]
  $region57: #{tpu_custom_call.1} parent=0
    _
  %s6 = ssub.s32 1, %s4
  %s7 = scalar_select 0, %s6, %s4
  $region1: #{tpu_custom_call.1} parent=0
    #allocation2 [shape = 'u8[16384]{0}', space=vmem, size = 0x4000, scoped, tag = 'input window, operand 0, single buffered']
    #allocation3 [shape = 's32[2]{0}', space=sflag, size = 0x8, scoped, tag = 'scoped memory for tpu_custom_call.1']
    #allocation4 [shape = 's32[2]{0}', space=sflag, size = 0x8, scoped, tag = 'scoped memory for tpu_custom_call.1']
    #allocation5 [shape = 'u8[16384]{0}', space=vmem, size = 0x4000, scoped, tag = 'input window, operand 1']
    #allocation6 [shape = 's32[2]{0}', space=sflag, size = 0x8, scoped, tag = 'scoped memory for tpu_custom_call.1']
    #allocation7 [shape = 'u8[65536]{0}', space=vmem, size = 0x10000, scoped, tag = 'input window, operand 2']
    #allocation8 [shape = 'u8[8192]{0}', space=vmem, size = 0x2000, scoped, tag = 'output window, operand 0']
    %8 = vsyncpa [#allocation3], 0
    %9 = vsyncpa [#allocation6], 0
    %s10 = scalar_lea.sflag [#allocation6], 1
    %11 = vsyncpa %s10, 0
    %12 = vsyncpa [#allocation4], 0
    %s13 = scalar_lea.sflag [#allocation4], 1
    %14 = vsyncpa %s13, 0
    loop: start=0, step=1, limit=4
    $region2: #{tpu_custom_call.1} parent=1 // loop_pre_header
      _
    $region3: #{tpu_custom_call.1} parent=1 // loop_header
      %s16 = sphi 0, %s20
      %p17 = scmp.ge.s32.totalorder %s16, 4
      %s24 = sphi 0, %s24
      %s26 = sphi 0, %s24
      %s27 = sphi 0, %s26
      %s41 = sphi 0, %s27
      %s47 = sphi 0, %s49
      %s50 = sphi 0, %s47
      %s51 = sphi 0, %s50
      %s67 = sphi 0, %s51
      %s73 = sphi 0, %s75
      %s76 = sphi 0, %s73
      %s77 = sphi 0, %s76
      %s93 = sphi 0, %s77
      %s99 = sphi 0, %s101
      %s102 = sphi 0, %s99
      %s103 = sphi 0, %s102
      %s119 = sphi 0, %s103
    $region4: #{tpu_custom_call.1} parent=1 // loop_header_branch
      %19 = sbr.rel (%p17) target = $region8
    $region5: #{tpu_custom_call.1} parent=1 // loop_body
      %s21 = ssub.s32 %s16, 1
      %s22 = ssub.s32 %s16, 2
      %s23 = sadd.s32 %s16, 1
      %s25 = sadd.s32 %s24, 1
      %p28 = scmp.eq.s32.totalorder %s16, 1
      %p29 = scmp.ne.s32.totalorder %s24, %s26
      %p30 = scmp.eq.s32.totalorder %s16, 0
      %p31 = por %p29, %p30
      %p32 = scmp.ne.s32.totalorder %s24, %s26
      %p33 = scmp.eq.s32.totalorder %s21, 1
      %p34 = por %p32, %p33
      %p35 = scmp.ne.s32.totalorder %s26, %s27
      %p36 = scmp.eq.s32.totalorder %s21, 0
      %p37 = por %p35, %p36
      %p38 = scmp.ne.s32.totalorder %s26, %s27
      %p39 = scmp.eq.s32.totalorder %s22, 1
      %p40 = por %p38, %p39
      %p42 = scmp.ne.s32.totalorder %s27, %s41
      %p43 = scmp.eq.s32.totalorder %s22, 0
      %p44 = por %p42, %p43
      %s45 = ssub.s32 %s16, %s23
      %p46 = scmp.eq.s32.totalorder %s45, 0
      %s48 = sadd.s32 %s47, 1
      %s49 = scalar_select %p46, %s47, %s48
      %p52 = pneg %p46
      %p53 = scmp.eq.s32.totalorder %s16, 1
      %p54 = por %p52, %p53
      %p55 = scmp.ne.s32.totalorder %s47, %s50
      %p56 = scmp.eq.s32.totalorder %s16, 0
      %p57 = por %p55, %p56
      %p58 = scmp.ne.s32.totalorder %s47, %s50
      %p59 = scmp.eq.s32.totalorder %s21, 1
      %p60 = por %p58, %p59
      %p61 = scmp.ne.s32.totalorder %s50, %s51
      %p62 = scmp.eq.s32.totalorder %s21, 0
      %p63 = por %p61, %p62
      %p64 = scmp.ne.s32.totalorder %s50, %s51
      %p65 = scmp.eq.s32.totalorder %s22, 1
      %p66 = por %p64, %p65
      %p68 = scmp.ne.s32.totalorder %s51, %s67
      %p69 = scmp.eq.s32.totalorder %s22, 0
      %p70 = por %p68, %p69
      %s71 = ssub.s32 %s16, %s23
      %p72 = scmp.eq.s32.totalorder %s71, 0
      %s74 = sadd.s32 %s73, 1
      %s75 = scalar_select %p72, %s73, %s74
      %p78 = pneg %p72
      %p79 = scmp.eq.s32.totalorder %s16, 1
      %p80 = por %p78, %p79
      %p81 = scmp.ne.s32.totalorder %s73, %s76
      %p82 = scmp.eq.s32.totalorder %s16, 0
      %p83 = por %p81, %p82
      %p84 = scmp.ne.s32.totalorder %s73, %s76
      %p85 = scmp.eq.s32.totalorder %s21, 1
      %p86 = por %p84, %p85
      %p87 = scmp.ne.s32.totalorder %s76, %s77
      %p88 = scmp.eq.s32.totalorder %s21, 0
      %p89 = por %p87, %p88
      %p90 = scmp.ne.s32.totalorder %s76, %s77
      %p91 = scmp.eq.s32.totalorder %s22, 1
      %p92 = por %p90, %p91
      %p94 = scmp.ne.s32.totalorder %s77, %s93
      %p95 = scmp.eq.s32.totalorder %s22, 0
      %p96 = por %p94, %p95
      %s97 = ssub.s32 %s16, %s23
      %p98 = scmp.eq.s32.totalorder %s97, 0
      %s100 = sadd.s32 %s99, 1
      %s101 = scalar_select %p98, %s99, %s100
      %p104 = pneg %p98
      %p105 = scmp.eq.s32.totalorder %s16, 1
      %p106 = por %p104, %p105
      %p107 = scmp.ne.s32.totalorder %s99, %s102
      %p108 = scmp.eq.s32.totalorder %s16, 0
      %p109 = por %p107, %p108
      %p110 = scmp.ne.s32.totalorder %s99, %s102
      %p111 = scmp.eq.s32.totalorder %s21, 1
      %p112 = por %p110, %p111
      %p113 = scmp.ne.s32.totalorder %s102, %s103
      %p114 = scmp.eq.s32.totalorder %s21, 0
      %p115 = por %p113, %p114
      %p116 = scmp.ne.s32.totalorder %s102, %s103
      %p117 = scmp.eq.s32.totalorder %s22, 1
      %p118 = por %p116, %p117
      %p120 = scmp.ne.s32.totalorder %s103, %s119
      %p121 = scmp.eq.s32.totalorder %s22, 0
      %p122 = por %p120, %p121
      %p123 = scmp.le.s32.totalorder 1, %s16
      %p124 = scmp.lt.s32.totalorder %s16, 3
      %p125 = pnand %p123, %p124
      %p126 = pneg %p125
      // Predicated region
      $region9: #{tpu_custom_call.1} parent=5 // pred_check
        _
      $region10: #{tpu_custom_call.1} parent=5 // pred_check_branch
        %128 = sbr.rel (%p125) target = $region12
      $region11: #{tpu_custom_call.1} parent=5 // pred_region
        %s129 = ssub.s32 %s16, 1
        // Predicated region
        $region13: #{tpu_custom_call.1} parent=11 // pred_check
          %p130 = pneg %p37
        $region14: #{tpu_custom_call.1} parent=11 // pred_check_branch
          %132 = sbr.rel (%p130) target = $region16
        $region15: #{tpu_custom_call.1} parent=11 // pred_region
          %s134 = ssub.s32 512, 512
          %135 = vsyncadd [#allocation3], %s134
          %s136 = sshll.u32 [#allocation2], 4
          %s137 = int_to_ptr.vmem [resolvable:$true] %s136
          %142 = dma.hbm_to_vmem [thread:$0]  %s0, 512, %s137, [#allocation3], 128, 128, 8
        $region16: #{tpu_custom_call.1} parent=11 // pred_fallthru
          _
      $region12: #{tpu_custom_call.1} parent=5 // pred_fallthru
        _
      %p143 = scmp.lt.s32.totalorder %s16, 2
      // Predicated region
      $region17: #{tpu_custom_call.1} parent=5 // pred_check
        %p144 = pneg %p143
      $region18: #{tpu_custom_call.1} parent=5 // pred_check_branch
        %146 = sbr.rel (%p144) target = $region20
      $region19: #{tpu_custom_call.1} parent=5 // pred_region
        // Predicated region
        $region21: #{tpu_custom_call.1} parent=19 // pred_check
          %p147 = pneg %p57
        $region22: #{tpu_custom_call.1} parent=19 // pred_check_branch
          %149 = sbr.rel (%p147) target = $region24
        $region23: #{tpu_custom_call.1} parent=19 // pred_region
          %s150 = sand.u32 %s16, 1
          %s151 = scalar_lea.sflag [#allocation6], %s150
          %s152 = sand.u32 %s47, 1
          %s153 = smul.addr %s152, 16
          %s154 = scalar_lea.vmem [#allocation5], %s153
          %s156 = ssub.s32 256, 256
          %157 = vsyncadd %s151, %s156
          %s158 = smul.addr %s16, 2
          %s159 = smul.addr %s158, 128
          %s160 = scalar_lea.hbm %s1, %s159
          %s161 = sshll.u32 %s154, 4
          %s162 = int_to_ptr.vmem [resolvable:$true] %s161
          %167 = dma.hbm_to_vmem [thread:$0]  %s160, 256, %s162, %s151, 128, 128, 8
        $region24: #{tpu_custom_call.1} parent=19 // pred_fallthru
          _
        // Predicated region
        $region25: #{tpu_custom_call.1} parent=19 // pred_check
          %p168 = pneg %p83
        $region26: #{tpu_custom_call.1} parent=19 // pred_check_branch
          %170 = sbr.rel (%p168) target = $region28
        $region27: #{tpu_custom_call.1} parent=19 // pred_region
          %s171 = sand.u32 %s16, 1
          %s172 = scalar_lea.sflag [#allocation6], %s171
          %s173 = sand.u32 %s73, 1
          %s174 = smul.addr %s173, 64
          %s175 = scalar_lea.vmem [#allocation7], %s174
          %s177 = ssub.s32 1024, 1024
          %178 = vsyncadd %s172, %s177
          %s179 = smul.addr %s16, 8
          %s180 = smul.addr %s179, 128
          %s181 = scalar_lea.hbm %s2, %s180
          %s182 = sshll.u32 %s175, 4
          %s183 = int_to_ptr.vmem [resolvable:$true] %s182
          %188 = dma.hbm_to_vmem [thread:$0]  %s181, 1024, %s183, %s172, 128, 128, 8
        $region28: #{tpu_custom_call.1} parent=19 // pred_fallthru
          _
      $region20: #{tpu_custom_call.1} parent=5 // pred_fallthru
        _
      %p189 = scmp.le.s32.totalorder 1, %s16
      %p190 = scmp.lt.s32.totalorder %s16, 3
      %p191 = pnand %p189, %p190
      %p192 = pneg %p191
      // Predicated region
      $region29: #{tpu_custom_call.1} parent=5 // pred_check
        _
      $region30: #{tpu_custom_call.1} parent=5 // pred_check_branch
        %194 = sbr.rel (%p191) target = $region32
      $region31: #{tpu_custom_call.1} parent=5 // pred_region
        %s195 = ssub.s32 %s16, 1
        // Predicated region
        $region33: #{tpu_custom_call.1} parent=31 // pred_check
          %p196 = pneg %p37
        $region34: #{tpu_custom_call.1} parent=31 // pred_check_branch
          %198 = sbr.rel (%p196) target = $region36
        $region35: #{tpu_custom_call.1} parent=31 // pred_region
          %199 = dma.done [#allocation3], 512
        $region36: #{tpu_custom_call.1} parent=31 // pred_fallthru
          _
        %s200 = sand.u32 %s21, 1
        %s201 = scalar_lea.sflag [#allocation6], %s200
        %s202 = sand.u32 %s50, 1
        %s203 = smul.addr %s202, 16
        %s204 = scalar_lea.vmem [#allocation5], %s203
        // Predicated region
        $region37: #{tpu_custom_call.1} parent=31 // pred_check
          %p205 = pneg %p63
        $region38: #{tpu_custom_call.1} parent=31 // pred_check_branch
          %207 = sbr.rel (%p205) target = $region40
        $region39: #{tpu_custom_call.1} parent=31 // pred_region
          %208 = dma.done %s201, 256
        $region40: #{tpu_custom_call.1} parent=31 // pred_fallthru
          _
        %s209 = sand.u32 %s21, 1
        %s210 = scalar_lea.sflag [#allocation6], %s209
        %s211 = sand.u32 %s76, 1
        %s212 = smul.addr %s211, 64
        %s213 = scalar_lea.vmem [#allocation7], %s212
        // Predicated region
        $region41: #{tpu_custom_call.1} parent=31 // pred_check
          %p214 = pneg %p89
        $region42: #{tpu_custom_call.1} parent=31 // pred_check_branch
          %216 = sbr.rel (%p214) target = $region44
        $region43: #{tpu_custom_call.1} parent=31 // pred_region
          %217 = dma.done %s210, 1024
        $region44: #{tpu_custom_call.1} parent=31 // pred_fallthru
          _
        %p218 = pneg %p37
        %p219 = pneg %p34
        %s220 = sand.u32 %s21, 1
        %s221 = scalar_lea.sflag [#allocation6], %s220
        %s222 = sand.u32 %s50, 1
        %s223 = smul.addr %s222, 16
        %s224 = scalar_lea.vmem [#allocation5], %s223
        %p225 = pneg %p63
        %p226 = pneg %p60
        %s227 = sand.u32 %s21, 1
        %s228 = scalar_lea.sflag [#allocation6], %s227
        %s229 = sand.u32 %s76, 1
        %s230 = smul.addr %s229, 64
        %s231 = scalar_lea.vmem [#allocation7], %s230
        %p232 = pneg %p89
        %p233 = pneg %p86
        %p234 = pneg %p115
        %p235 = pneg %p112
        %s236 = sand.u32 %s102, 1
        %s237 = scalar_lea.sflag [#allocation4], %s236
        %s238 = sand.u32 %s102, 1
        %s239 = smul.addr %s238, 8
        %s240 = scalar_lea.vmem [#allocation8], %s239
        %v241 = vld [vmem:[#allocation2] sm:$0xff]
        %v242 = vld [vmem:[#allocation2 + $0x8] sm:$0xff]
        %s243 = scalar_lea.vmem [#allocation2], 16
        %v244 = vld [vmem:[%s243] sm:$0xff]
        %v245 = vld [vmem:[%s243 + $0x8] sm:$0xff]
        %v246 = vld [vmem:[%s204] sm:$0xff]
        %v247 = vld [vmem:[%s204 + $0x8] sm:$0xff]
        %248 = vrot.lane.b32.xlu0 %v246, 127
        %v249 = vpop.permute.xlu0 %248
        %250 = vrot.lane.b32.xlu0 %v247, 127
        %v251 = vpop.permute.xlu0 %250
        %v252 = vsub.f32 %v246, %v249
        %v253 = vsub.f32 %v247, %v251
        %v254 = vand.u32 2147483647, %v252
        %v255 = vand.u32 2147483647, %v253
        %v256 = vrot.slane %v246, 1
        %v257 = vrot.slane %v247, 1
        %v258 = vlaneseq
        %v259 = vshrl.u32 %v258, 7
        %vm260 = vcmp.lt.s32.totalorder %v259, 7
        %v261 = vsel %vm260, %v256, %v257
        %v262 = vsel %vm260, %v257, %v256
        %v263 = vsub.f32 %v246, %v261
        %v264 = vsub.f32 %v247, %v262
        %v265 = vand.u32 2147483647, %v263
        %v266 = vand.u32 2147483647, %v264
        %v267 = vld [vmem:[%s213] sm:$0xff]
        %v268 = vld [vmem:[%s213 + $0x8] sm:$0xff]
        %269 = vrot.lane.b32.xlu0 %v267, 127
        %v270 = vpop.permute.xlu0 %269
        %271 = vrot.lane.b32.xlu0 %v268, 127
        %v272 = vpop.permute.xlu0 %271
        %v273 = vsub.f32 %v267, %v270
        %v274 = vsub.f32 %v268, %v272
        %v275 = vand.u32 2147483647, %v273
        %v276 = vand.u32 2147483647, %v274
        %v277 = vadd.f32 %v275, 0.0
        %v278 = vadd.f32 %v276, 0.0
        %v279 = vrot.slane %v267, 1
        %v280 = vrot.slane %v268, 1
        %v281 = vsel %vm260, %v279, %v280
        %v282 = vsel %vm260, %v280, %v279
        %v283 = vsub.f32 %v267, %v281
        %v284 = vsub.f32 %v268, %v282
        %v285 = vand.u32 2147483647, %v283
        %v286 = vand.u32 2147483647, %v284
        %v287 = vadd.f32 %v285, 0.0
        %v288 = vadd.f32 %v286, 0.0
        %s289 = scalar_lea.vmem %s213, 16 [#allocation7]
        %v290 = vld [vmem:[%s289] sm:$0xff]
        %v291 = vld [vmem:[%s289 + $0x8] sm:$0xff]
        %292 = vrot.lane.b32.xlu0 %v290, 127
        %v293 = vpop.permute.xlu0 %292
        %294 = vrot.lane.b32.xlu0 %v291, 127
        %v295 = vpop.permute.xlu0 %294
        %v296 = vsub.f32 %v290, %v293
        %v297 = vsub.f32 %v291, %v295
        %v298 = vand.u32 2147483647, %v296
        %v299 = vand.u32 2147483647, %v297
        %v300 = vadd.f32 %v277, %v298
        %v301 = vadd.f32 %v278, %v299
        %v302 = vrot.slane %v290, 1
        %v303 = vrot.slane %v291, 1
        %v304 = vsel %vm260, %v302, %v303
        %v305 = vsel %vm260, %v303, %v302
        %v306 = vsub.f32 %v290, %v304
        %v307 = vsub.f32 %v291, %v305
        %v308 = vand.u32 2147483647, %v306
        %v309 = vand.u32 2147483647, %v307
        %v310 = vadd.f32 %v287, %v308
        %v311 = vadd.f32 %v288, %v309
        %s312 = scalar_lea.vmem %s213, 32 [#allocation7]
        %v313 = vld [vmem:[%s312] sm:$0xff]
        %v314 = vld [vmem:[%s312 + $0x8] sm:$0xff]
        %315 = vrot.lane.b32.xlu0 %v313, 127
        %v316 = vpop.permute.xlu0 %315
        %317 = vrot.lane.b32.xlu0 %v314, 127
        %v318 = vpop.permute.xlu0 %317
        %v319 = vsub.f32 %v313, %v316
        %v320 = vsub.f32 %v314, %v318
        %v321 = vand.u32 2147483647, %v319
        %v322 = vand.u32 2147483647, %v320
        %v323 = vadd.f32 %v300, %v321
        %v324 = vadd.f32 %v301, %v322
        %v325 = vrot.slane %v313, 1
        %v326 = vrot.slane %v314, 1
        %v327 = vsel %vm260, %v325, %v326
        %v328 = vsel %vm260, %v326, %v325
        %v329 = vsub.f32 %v313, %v327
        %v330 = vsub.f32 %v314, %v328
        %v331 = vand.u32 2147483647, %v329
        %v332 = vand.u32 2147483647, %v330
        %v333 = vadd.f32 %v310, %v331
        %v334 = vadd.f32 %v311, %v332
        %s335 = scalar_lea.vmem %s213, 48 [#allocation7]
        %v336 = vld [vmem:[%s335] sm:$0xff]
        %v337 = vld [vmem:[%s335 + $0x8] sm:$0xff]
        %338 = vrot.lane.b32.xlu0 %v336, 127
        %v339 = vpop.permute.xlu0 %338
        %340 = vrot.lane.b32.xlu0 %v337, 127
        %v341 = vpop.permute.xlu0 %340
        %v342 = vsub.f32 %v336, %v339
        %v343 = vsub.f32 %v337, %v341
        %v344 = vand.u32 2147483647, %v342
        %v345 = vand.u32 2147483647, %v343
        %v346 = vadd.f32 %v323, %v344
        %v347 = vadd.f32 %v324, %v345
        %v348 = vrot.slane %v336, 1
        %v349 = vrot.slane %v337, 1
        %v350 = vsel %vm260, %v348, %v349
        %v351 = vsel %vm260, %v349, %v348
        %v352 = vsub.f32 %v336, %v350
        %v353 = vsub.f32 %v337, %v351
        %v354 = vand.u32 2147483647, %v352
        %v355 = vand.u32 2147483647, %v353
        %v356 = vadd.f32 %v333, %v354
        %v357 = vadd.f32 %v334, %v355
        %v358 = vmul.f32 %v346, -0.25
        %v359 = vmul.f32 %v347, -0.25
        %v360 = vmul.f32 %v358, 1.442695
        %v361 = vpow.pop %v360
        %v362 = vmul.f32 %v359, 1.442695
        %v363 = vpow.pop %v362
        %v364 = vmul.f32 %v254, %v361
        %v365 = vmul.f32 %v255, %v363
        %v366 = vmul.f32 %v364, %v241
        %v367 = vmul.f32 %v365, %v242
        %v368 = vmul.f32 %v356, -0.25
        %v369 = vmul.f32 %v357, -0.25
        %v370 = vmul.f32 %v368, 1.442695
        %v371 = vpow.pop %v370
        %v372 = vmul.f32 %v369, 1.442695
        %v373 = vpow.pop %v372
        %v374 = vmul.f32 %v265, %v371
        %v375 = vmul.f32 %v266, %v373
        %v376 = vmul.f32 %v374, %v244
        %v377 = vmul.f32 %v375, %v245
        %v378 = vadd.f32 %v366, %v376
        %v379 = vadd.f32 %v367, %v377
        %v380 = vadd.f32 %v378, 0.0
        %v381 = vadd.f32 %v379, 0.0
        %v382 = vadd.f32 %v380, %v381
        %383 = vadd.xlane.f32.xlu0 %v382
        %v384 = vpop.xlane.xlu0 %383
        %v385 = vrot.slane %v384, 4
        %v386 = vadd.f32 %v384, %v385
        %v387 = vrot.slane %v386, 2
        %v388 = vadd.f32 %v386, %v387
        %v389 = vrot.slane %v388, 1
        %v390 = vadd.f32 %v388, %v389
        %s391 = vtos %v390
        %v392 = vstv %s391
        %393 = vst [vmem:[%s240] sm:$0xff] %v392
        %s394 = sand.u32 %s102, 1
        %s395 = scalar_lea.sflag [#allocation4], %s394
        %s396 = sand.u32 %s102, 1
        %s397 = smul.addr %s396, 8
        %s398 = scalar_lea.vmem [#allocation8], %s397
        // Predicated region
        $region45: #{tpu_custom_call.1} parent=31 // pred_check
          %p399 = pneg %p112
        $region46: #{tpu_custom_call.1} parent=31 // pred_check_branch
          %401 = sbr.rel (%p399) target = $region48
        $region47: #{tpu_custom_call.1} parent=31 // pred_region
          %s403 = ssub.s32 128, 128
          %404 = vsyncadd %s395, %s403
          %s405 = smul.addr %s21, 128
          %s406 = scalar_lea.hbm %s3, %s405
          %s408 = sshll.u32 %s398, 4
          %s409 = int_to_ptr.vmem [resolvable:$true] %s408
          %411 = dma.vmem_to_hbm [thread:$0]  %s409, 128, %s406, %s395
        $region48: #{tpu_custom_call.1} parent=31 // pred_fallthru
          _
      $region32: #{tpu_custom_call.1} parent=5 // pred_fallthru
        _
      %p412 = scmp.le.s32.totalorder 2, %s16
      // Predicated region
      $region49: #{tpu_custom_call.1} parent=5 // pred_check
        %p413 = pneg %p412
      $region50: #{tpu_custom_call.1} parent=5 // pred_check_branch
        %415 = sbr.rel (%p413) target = $region52
      $region51: #{tpu_custom_call.1} parent=5 // pred_region
        %s416 = ssub.s32 %s16, 2
        // Predicated region
        $region53: #{tpu_custom_call.1} parent=51 // pred_check
          %p417 = pneg %p118
        $region54: #{tpu_custom_call.1} parent=51 // pred_check_branch
          %419 = sbr.rel (%p417) target = $region56
        $region55: #{tpu_custom_call.1} parent=51 // pred_region
          %s420 = sand.u32 %s103, 1
          %s421 = scalar_lea.sflag [#allocation4], %s420
          %s422 = sand.u32 %s103, 1
          %s423 = smul.addr %s422, 8
          %s424 = scalar_lea.vmem [#allocation8], %s423
          %425 = dma.done %s421, 128
        $region56: #{tpu_custom_call.1} parent=51 // pred_fallthru
          _
      $region52: #{tpu_custom_call.1} parent=5 // pred_fallthru
        _
    $region6: #{tpu_custom_call.1} parent=1 // loop_footer
      %s20 = sadd.s32 1, %s16
    $region7: #{tpu_custom_call.1} parent=1 // loop_footer_branch
      %15 = sbr.rel target = $region3
    $region8: #{tpu_custom_call.1} parent=1 // loop_exit
      _
    %426 = vsyncpa [#allocation3], 1
    %s427 = scalar_lea.sflag [#allocation3], 1
    %428 = vsyncpa %s427, 1
    %429 = vsyncpa [#allocation6], 1
    %s430 = scalar_lea.sflag [#allocation6], 1
    %431 = vsyncpa %s430, 1
    %432 = vsyncpa [#allocation4], 1
    %s433 = scalar_lea.sflag [#allocation4], 1
    %434 = vsyncpa %s433, 1

</llo_original>
